<compile_context>
chip_gen: v5e
topology: v5e:2x2
jax: 0.10.0
libtpu: 0.0.40
codegen_flags: <defaults>
</compile_context>

<pallas_src>
import functools

import jax
import jax.numpy as jnp
from jax import lax
from jax.experimental import pallas as pl
from jax.experimental.pallas import tpu as pltpu


def _spectrum_attention_kernel(m_ref, s_ref, o_ref, *, matmul_dtype):
    """Per-call work: out = s @ (M @ M^T), both contractions on the MXU."""
    M = m_ref[...]                                         # (D, H) f32
    s = s_ref[...]                                         # (B, D) f32

    if matmul_dtype is not None:                           # bf16 operand path (v6e/v7x)
        M = M.astype(matmul_dtype)
        s = s.astype(matmul_dtype)

    # W[d1, d2] = sum_h M[d1, h] * M[d2, h]   -- D rows into the MXU (better fill
    # than the B=2-row path), f32 accumulation.
    W = lax.dot_general(
        M, M,
        dimension_numbers=(((1,), (1,)), ((), ())),
        preferred_element_type=jnp.float32,
    )                                                      # (D, D), symmetric

    if matmul_dtype is not None:
        W = W.astype(matmul_dtype)

    # out = s @ W   (single small batch matmul; W symmetric so no transpose needed).
    out = jnp.dot(s, W, preferred_element_type=jnp.float32)  # (B, D)

    # TODO(synk): when B/D grow, present a lane-dense (multiple-of-128) output slab
    # instead of this masked partial store.
    o_ref[...] = out.astype(o_ref.dtype)


def spectrum_attention(s, Q, pi, *, matmul_dtype=None):
    """Forward pass of SpectrumAttention.

    s : (B, D) float32, Q : (D, H, N) float32, pi : (N,) float32.
    matmul_dtype: None (pure f32) or jnp.bfloat16 to run the two MXU matmuls with
    bf16 operands (f32 accumulate) — recommended on v6e/v7x once shapes scale.
    """
    B, D = s.shape
    D2, H, N = Q.shape
    assert D == D2

    # ---- parameter-only work (feedback #1): hoisted out of the per-call kernel ----
    # M depends only on (Q, pi); under jit this fuses into a cheap XLA op and in a
    # real deployment it (or W = M @ M^T) is cached across calls.
    M = jnp.einsum("dhn,n->dh", Q, pi).astype(jnp.float32)   # (D, H)

    kernel = functools.partial(_spectrum_attention_kernel, matmul_dtype=matmul_dtype)

    return pl.pallas_call(
        kernel,
        out_shape=jax.ShapeDtypeStruct((B, D), jnp.float32),
        in_specs=[
            pl.BlockSpec(memory_space=pltpu.MemorySpace.VMEM),   # M (D, H)
            pl.BlockSpec(memory_space=pltpu.MemorySpace.VMEM),   # s (B, D)
        ],
        out_specs=pl.BlockSpec(memory_space=pltpu.MemorySpace.VMEM),
    )(M, s)


if __name__ == "__main__":
    # Small shapes consistent with the module: s is (B, D), Q is (D, H, N), pi is (N,).
    B, D, H, N = 2, 32, 16, 8
    alpha = 10.0

    key = jax.random.PRNGKey(0)
    k_pi, k_q, k_s = jax.random.split(key, 3)

    # Deterministic parameter init mirroring __init__:
    #   pi ~ Dirichlet(alpha * ones(N)),  Q ~ Normal(0, 1, (D, H, N))
    pi = jax.random.dirichlet(k_pi, alpha * jnp.ones((N,), jnp.float32)).astype(jnp.float32)
    Q = jax.random.normal(k_q, (D, H, N), dtype=jnp.float32)
    s = jax.random.normal(k_s, (B, D), dtype=jnp.float32)

    out = spectrum_attention(s, Q, pi)          # default f32 matmuls (exact check)
    out = jax.block_until_ready(out)

    # Pure-JAX reference of the PyTorch semantics: (s @ M) @ M^T.
    M_ref = jnp.einsum("dhn,n->dh", Q, pi)
    ref = (s @ M_ref) @ M_ref.T
    assert out.shape == (B, D)
    assert jnp.allclose(out, ref, atol=1e-3, rtol=1e-3)

    print("KERNEL_OK")
</pallas_src>

<mosaic_0001>
module attributes {stable_mosaic.version = 11 : i64} {
  func.func @_spectrum_attention_kernel(%arg0: memref<32x16xf32, #tpu.memory_space<vmem>>, %arg1: memref<2x32xf32, #tpu.memory_space<vmem>>, %arg2: memref<2x32xf32, #tpu.memory_space<vmem>>) attributes {dimension_semantics = [], scalar_prefetch = 0 : i64, scratch_operands = 0 : i64, tpu.core_type = #tpu.core_type<tc>} {
    %c0 = arith.constant 0 : index
    %c0_0 = arith.constant 0 : index
    %0 = vector.load %arg0[%c0, %c0_0] : memref<32x16xf32, #tpu.memory_space<vmem>>, vector<32x16xf32>
    %c0_1 = arith.constant 0 : index
    %c0_2 = arith.constant 0 : index
    %1 = vector.load %arg1[%c0_1, %c0_2] : memref<2x32xf32, #tpu.memory_space<vmem>>, vector<2x32xf32>
    %cst = arith.constant dense<0.000000e+00> : vector<32x32xf32>
    %2 = tpu.matmul %0, %0, %cst {dimension_numbers = #tpu.dot_dimension_numbers<[1], [1], [0], [0], [0, 0, 1, 0], [], []>} : vector<32x16xf32>, vector<32x16xf32>, vector<32x32xf32> -> vector<32x32xf32>
    %cst_3 = arith.constant dense<0.000000e+00> : vector<2x32xf32>
    %3 = tpu.matmul %1, %2, %cst_3 {dimension_numbers = #tpu.dot_dimension_numbers<[1], [0], [0], [1], [0, 0, 1, 1], [], []>} : vector<2x32xf32>, vector<32x32xf32>, vector<2x32xf32> -> vector<2x32xf32>
    %c0_4 = arith.constant 0 : index
    %c0_5 = arith.constant 0 : index
    %4 = vector.load %arg2[%c0_4, %c0_5] : memref<2x32xf32, #tpu.memory_space<vmem>>, vector<2x32xf32>
    tpu.vector_store %arg2[%c0_4, %c0_5], %3 {strides = array<i32>} : memref<2x32xf32, #tpu.memory_space<vmem>>, vector<2x32xf32>,
    return
  }
}

</mosaic_0001>

<llo_original>
// kernel: tpu_custom_call.1
$region0: #{tpu_custom_call.1}
  #allocation0 [shape = 'u32[]', space=smem, size = 0x4, offset = 0x4, fixed_abs, tag = 'smem constant byte address 0x4 - core index']
  #allocation1 [shape = 'u32[72,128]{1,0:T(1,128)}', space=vmem, size = 0x9000, scoped, tag = 'internal scratch']
  %s0 = inlined_call_operand.vmem [shape: f32[32,16], index: 0, kind: input, shape index: {}]
  %s1 = inlined_call_operand.vmem [shape: f32[2,32], index: 1, kind: input, shape index: {}]
  %s2 = inlined_call_operand.hbm [shape: f32[2,32], index: 2, kind: output, shape index: {}]
  %s3 = sld [smem:[#allocation0]]
  $region18: #{tpu_custom_call.1} parent=0
    _
  %s5 = ssub.s32 1, %s3
  %s6 = scalar_select 0, %s5, %s3
  $region1: #{tpu_custom_call.1} parent=0
    #allocation2 [shape = 'u8[1024]{0}', space=vmem, size = 0x400, scoped, tag = 'output window, operand 0, single buffered']
    #allocation3 [shape = 's32[1]{0}', space=sflag, size = 0x4, scoped, tag = 'scoped memory for tpu_custom_call.1']
    %7 = vsyncpa [#allocation3], 0
    // Predicated region
    $region2: #{tpu_custom_call.1} parent=1 // pred_check
      _
    $region3: #{tpu_custom_call.1} parent=1 // pred_check_branch
      %9 = sbr.rel (0) target = $region5
    $region4: #{tpu_custom_call.1} parent=1 // pred_region
      _
    $region5: #{tpu_custom_call.1} parent=1 // pred_fallthru
      _
    // Predicated region
    $region6: #{tpu_custom_call.1} parent=1 // pred_check
      _
    $region7: #{tpu_custom_call.1} parent=1 // pred_check_branch
      %11 = sbr.rel (0) target = $region9
    $region8: #{tpu_custom_call.1} parent=1 // pred_region
      _
    $region9: #{tpu_custom_call.1} parent=1 // pred_fallthru
      _
    %v12 = vld [vmem:[%s0] sm:$0xff]
    %v13 = vld [vmem:[%s0 + $0x8] sm:$0xff]
    %v14 = vld [vmem:[%s0 + $0x10] sm:$0xff]
    %v15 = vld [vmem:[%s0 + $0x18] sm:$0xff]
    %v16 = vld [vmem:[%s1] sm:$0x3]
    %vm17 = vcmask 130048
    %v19 = vsel %vm17, %v12, 0
    %v22 = vsel %vm17, %v13, 0
    %v25 = vsel %vm17, %v14, 0
    %v28 = vsel %vm17, %v15, 0
    %30 = vmatpush.xpose.msra.mxu0 0.0
    %31 = vmatpush.xpose.msra.mxu0 0.0
    %32 = vmatpush.xpose.msra.mxu0 0.0
    %33 = vmatpush.xpose.msra.mxu0 0.0
    %34 = vmatpush.xpose.msra.mxu0 0.0
    %35 = vmatpush.xpose.msra.mxu0 0.0
    %36 = vmatpush.xpose.msra.mxu0 0.0
    %37 = vmatpush.xpose.msra.mxu0 0.0
    %38 = vmatpush.xpose.msra.mxu0 0.0
    %39 = vmatpush.xpose.msra.mxu0 0.0
    %40 = vmatpush.xpose.msra.mxu0 0.0
    %41 = vmatpush.xpose.msra.mxu0 0.0
    %42 = vmatpush.xpose.msra.mxu0 %v28
    %43 = vmatpush.xpose.msra.mxu0 %v25
    %44 = vmatpush.xpose.msra.mxu0 %v22
    %45 = vmatpush.xpose.msra.mxu0 %v19
    %46 = vmatmul.f32.gmra.mxu0 %v19
    %v47 = vpop.f32.mrf.mxu0
    %v48 = vadd.f32 0.0, %v47
    %49 = vmatmul.f32.gmra.mxu0 %v22
    %v50 = vpop.f32.mrf.mxu0
    %v51 = vadd.f32 0.0, %v50
    %52 = vmatmul.f32.gmra.mxu0 %v25
    %v53 = vpop.f32.mrf.mxu0
    %v54 = vadd.f32 0.0, %v53
    %55 = vmatmul.f32.gmra.mxu0 %v28
    %v56 = vpop.f32.mrf.mxu0
    %v57 = vadd.f32 0.0, %v56
    %58 = vdwg.mxu0
    %vm59 = vcmask 261120
    %v61 = vsel %vm59, %v16, 0
    %63 = vmatpush.msra.mxu0 0.0
    %64 = vmatpush.msra.mxu0 0.0
    %65 = vmatpush.msra.mxu0 0.0
    %66 = vmatpush.msra.mxu0 0.0
    %67 = vmatpush.msra.mxu0 0.0
    %68 = vmatpush.msra.mxu0 0.0
    %69 = vmatpush.msra.mxu0 0.0
    %70 = vmatpush.msra.mxu0 0.0
    %71 = vmatpush.msra.mxu0 0.0
    %72 = vmatpush.msra.mxu0 0.0
    %73 = vmatpush.msra.mxu0 0.0
    %74 = vmatpush.msra.mxu0 0.0
    %75 = vmatpush.msra.mxu0 %v57
    %76 = vmatpush.msra.mxu0 %v54
    %77 = vmatpush.msra.mxu0 %v51
    %78 = vmatpush.msra.mxu0 %v48
    %79 = vmatmul.f32.gmra.mxu0 %v61
    %v80 = vpop.f32.mrf.mxu0
    %v81 = vadd.f32 0.0, %v80
    %82 = vdwg.mxu0
    %vm83 = vcmask 254976
    %84 = vst.msk [vmem:[#allocation2] sm:$0x3] %vm83, %v81
    // Predicated region
    $region10: #{tpu_custom_call.1} parent=1 // pred_check
      _
    $region11: #{tpu_custom_call.1} parent=1 // pred_check_branch
      %86 = sbr.rel (0) target = $region13
    $region12: #{tpu_custom_call.1} parent=1 // pred_region
      %88 = vsyncadd [#allocation3], 0
      %s90 = sshll.u32 [#allocation2], 4
      %s91 = int_to_ptr.vmem [resolvable:$true] %s90
      %s92 = sshll.u32 %s2, 4
      %s93 = int_to_ptr.hbm [resolvable:$true] %s92
      %95 = dma.vmem_to_hbm [thread:$0]  %s91, 32, %s93, [#allocation3]
    $region13: #{tpu_custom_call.1} parent=1 // pred_fallthru
      _
    // Predicated region
    $region14: #{tpu_custom_call.1} parent=1 // pred_check
      _
    $region15: #{tpu_custom_call.1} parent=1 // pred_check_branch
      %97 = sbr.rel (0) target = $region17
    $region16: #{tpu_custom_call.1} parent=1 // pred_region
      %99 = dma.done [#allocation3], 32
    $region17: #{tpu_custom_call.1} parent=1 // pred_fallthru
      _
    %100 = vsyncpa [#allocation3], 1

</llo_original>
